<compile_context>
chip_gen: v5e
topology: v5e:2x2
jax: 0.10.0
libtpu: 0.0.40
codegen_flags: <defaults>
</compile_context>

<pallas_src>
import jax
import jax.numpy as jnp
import numpy as np
from jax.experimental import pallas as pl
from jax.experimental.pallas import tpu as pltpu

_VMEM_LIMIT_BYTES = 32 * 1024 * 1024   # >= scoped default everywhere, fits v7x (64 MiB phys)


def _round_up(x, m):
    return (x + m - 1) // m * m


def _choose_prior_tile(p_pad, max_tile):
    """Largest multiple of 128 that divides p_pad (itself a multiple of 128) and <= max_tile."""
    if p_pad <= max_tile:
        return p_pad
    t = max_tile - (max_tile % 128)
    while t >= 128:
        if p_pad % t == 0:
            return t
        t -= 128
    return p_pad


def _split_tiles(n_tiles):
    """Split the prior-tile axis into 2 'parallel' halves when possible (v7x dual-TC)."""
    if n_tiles % 2 == 0 and n_tiles >= 2:
        return 2, n_tiles // 2
    return 1, n_tiles


def _smooth_l1(x):
    ax = jnp.abs(x)
    return jnp.where(ax < 1.0, 0.5 * x * x, ax - 0.5)


# ------------------------------ Pallas stage 1 ------------------------------ #
def multibox_stage1(cls_p, loc_p, landm_p, tgt_p, conf_p, num_priors, max_p_tile=16384):
    """Inputs are lane-major: cls (N,C,Pp), loc (N,4,Pp), landm (N,10,Pp),
    tgt (N,14,Pp) [rows 0:4 loc_t, 4:14 landm_t], conf (N,1,Pp) int32.
    Returns per-prior CE (N,1,Pp) f32 (padded lanes forced to -1) and per-image
    stats (N,4) f32: [loss_l, loss_landm, num_pos, num_pos_landm]."""
    num, num_classes, p_pad = cls_p.shape
    pt = _choose_prior_tile(p_pad, max_p_tile)
    n_tiles = p_pad // pt
    n_half, tiles_per_half = _split_tiles(n_tiles)

    def kernel(cls_ref, loc_ref, landm_ref, tgt_ref, conf_ref, ce_ref, stats_ref):
        t = pl.program_id(2)
        conf = conf_ref[...]                                  # (1,1,pt) int32
        pos = conf != 0                                       # loc / conf positives
        pos1 = conf > 0                                       # landmark positives

        loc_d = loc_ref[...].astype(jnp.float32) - tgt_ref[:, 0:4, :].astype(jnp.float32)
        part_l = jnp.sum(jnp.where(pos, _smooth_l1(loc_d), 0.0), axis=1, keepdims=True)

        lm_d = landm_ref[...].astype(jnp.float32) - tgt_ref[:, 4:14, :].astype(jnp.float32)
        part_lm = jnp.sum(jnp.where(pos1, _smooth_l1(lm_d), 0.0), axis=1, keepdims=True)

        # per-prior cross entropy over the (sublane) class axis
        logits = cls_ref[...].astype(jnp.float32)             # (1,C,pt)
        m = jnp.max(logits, axis=1, keepdims=True)
        lse = jnp.log(jnp.sum(jnp.exp(logits - m), axis=1, keepdims=True)) + m
        cls_iota = jax.lax.broadcasted_iota(jnp.int32, logits.shape, 1)
        tgt_logit = jnp.sum(jnp.where(cls_iota == conf, logits, 0.0), axis=1, keepdims=True)
        ce = lse - tgt_logit                                   # (1,1,pt), always >= 0

        # Padded lanes must never be mined as negatives: force their CE below any
        # real CE (>= 0) so the descending order / threshold ignores them.
        tile_id = pl.program_id(1) * tiles_per_half + t
        lane = jax.lax.broadcasted_iota(jnp.int32, ce.shape, 2)
        ce = jnp.where(lane + tile_id * pt < num_priors, ce, -1.0)
        ce_ref[...] = ce

        part = jnp.concatenate(
            [part_l, part_lm, pos.astype(jnp.float32), pos1.astype(jnp.float32)], axis=1)

        @pl.when(t == 0)
        def _():
            stats_ref[...] = jnp.zeros_like(stats_ref)

        stats_ref[...] += part

    def in_spec(f):
        return pl.BlockSpec((1, f, pt), lambda b, h, t: (b, 0, h * tiles_per_half + t))

    ce, stats = pl.pallas_call(
        kernel,
        grid=(num, n_half, tiles_per_half),
        in_specs=[in_spec(num_classes), in_spec(4), in_spec(10), in_spec(14), in_spec(1)],
        out_specs=(
            pl.BlockSpec((1, 1, pt), lambda b, h, t: (b, 0, h * tiles_per_half + t)),
            pl.BlockSpec((1, 4, pt), lambda b, h, t: (b * n_half + h, 0, 0)),  # resident acc
        ),
        out_shape=(
            jax.ShapeDtypeStruct((num, 1, p_pad), jnp.float32),
            jax.ShapeDtypeStruct((num * n_half, 4, pt), jnp.float32),
        ),
        compiler_params=pltpu.CompilerParams(
            dimension_semantics=("parallel", "parallel", "arbitrary"),
            vmem_limit_bytes=_VMEM_LIMIT_BYTES),
    )(cls_p, loc_p, landm_p, tgt_p, conf_p)

    per_image = jnp.sum(stats.reshape(num, n_half, 4, pt), axis=(1, 3))   # (N,4)
    return ce, per_image


# ------------------------------ Pallas stage 2 ------------------------------ #
def mined_ce_sum(ce, conf_p, thresh, max_p_tile=32768):
    """Sum of CE over (positive | mined-negative) priors.  thresh (N,) f32 is the
    per-image num_neg-th largest CE (+inf when num_neg == 0), delivered via SMEM."""
    num, _, p_pad = ce.shape
    pt = _choose_prior_tile(p_pad, max_p_tile)
    n_tiles = p_pad // pt
    n_half, tiles_per_half = _split_tiles(n_tiles)

    def kernel(thresh_ref, ce_ref, conf_ref, out_ref):
        b = pl.program_id(0)

        @pl.when(pl.program_id(2) == 0)
        def _():
            out_ref[...] = jnp.zeros_like(out_ref)

        ce_v = ce_ref[...]
        pos = conf_ref[...] != 0
        sel = jnp.logical_or(pos, ce_v >= thresh_ref[b])
        out_ref[...] += jnp.where(sel, ce_v, 0.0)

    blk = pl.BlockSpec((1, 1, pt), lambda b, h, t: (b, 0, h * tiles_per_half + t))

    partial = pl.pallas_call(
        kernel,
        grid=(num, n_half, tiles_per_half),
        in_specs=[pl.BlockSpec(memory_space=pltpu.MemorySpace.SMEM), blk, blk],
        out_specs=pl.BlockSpec((1, 1, pt), lambda b, h, t: (b * n_half + h, 0, 0)),
        out_shape=jax.ShapeDtypeStruct((num * n_half, 1, pt), jnp.float32),
        compiler_params=pltpu.CompilerParams(
            dimension_semantics=("parallel", "parallel", "arbitrary"),
            vmem_limit_bytes=_VMEM_LIMIT_BYTES),
    )(thresh, ce, conf_p)
    return jnp.sum(partial)


# --------------------------- matching glue (JAX) --------------------------- #
def point_form(priors):
    return jnp.concatenate([priors[:, :2] - priors[:, 2:] / 2.0,
                            priors[:, :2] + priors[:, 2:] / 2.0], axis=1)


def jaccard(box_a, box_b):
    max_xy = jnp.minimum(box_a[:, None, 2:], box_b[None, :, 2:])
    min_xy = jnp.maximum(box_a[:, None, :2], box_b[None, :, :2])
    wh = jnp.clip(max_xy - min_xy, 0.0)
    inter = wh[..., 0] * wh[..., 1]
    area_a = ((box_a[:, 2] - box_a[:, 0]) * (box_a[:, 3] - box_a[:, 1]))[:, None]
    area_b = ((box_b[:, 2] - box_b[:, 0]) * (box_b[:, 3] - box_b[:, 1]))[None, :]
    return inter / (area_a + area_b - inter)


def encode(matched, priors, variances):
    # returns (4, P): already priors-on-lanes for the Pallas kernels
    g_cxcy = ((matched[:, :2] + matched[:, 2:]) / 2.0 - priors[:, :2]) / (variances[0] * priors[:, 2:])
    g_wh = jnp.log((matched[:, 2:] - matched[:, :2]) / priors[:, 2:]) / variances[1]
    return jnp.concatenate([g_cxcy, g_wh], axis=1).T


def encode_landm(matched, priors, variances):
    m = matched.reshape(-1, 5, 2)
    g = (m - priors[:, None, :2]) / (variances[0] * priors[:, None, 2:])
    return g.reshape(-1, 10).T                                 # (10, P)


def match(threshold, truths, priors, variances, labels, landms):
    overlaps = jaccard(truths, point_form(priors))             # (T, P)
    best_prior_overlap = overlaps.max(axis=1)
    best_prior_idx = overlaps.argmax(axis=1)
    valid_gt = best_prior_overlap >= 0.2
    any_valid = jnp.any(valid_gt)                              # torch early-return flag
    best_truth_overlap = overlaps.max(axis=0)                  # (P,)
    best_truth_idx = overlaps.argmax(axis=0)                   # (P,)
    # index_fill_(0, best_prior_idx[valid_gt], 2) — invalid GTs contribute -1 (no-op under max)
    best_truth_overlap = best_truth_overlap.at[best_prior_idx].max(
        jnp.where(valid_gt, 2.0, -1.0))
    best_truth_idx = best_truth_idx.at[best_prior_idx].set(
        jnp.arange(truths.shape[0], dtype=best_truth_idx.dtype))
    matches = truths[best_truth_idx]
    conf = labels[best_truth_idx].astype(jnp.int32)
    conf = jnp.where(best_truth_overlap < threshold, 0, conf)
    loc = encode(matches, priors, variances)                   # (4, P)
    landm = encode_landm(landms[best_truth_idx], priors, variances)  # (10, P)
    # torch match early-returns (conf_t[idx]=0, loc_t[idx]=0) when no GT has IoU>=0.2
    conf = jnp.where(any_valid, conf, 0)
    loc = jnp.where(any_valid, loc, 0.0)
    return loc, conf, landm


# ------------------------------- loss module ------------------------------- #
class MultiBoxLoss:
    def __init__(self, num_classes, overlap_thresh, prior_for_matching, bkg_label,
                 neg_mining, neg_pos, neg_overlap, encode_target,
                 compute_dtype=jnp.bfloat16, predictions_transposed=False,
                 max_p_tile_stage1=16384, max_p_tile_stage2=32768):
        self.num_classes = num_classes
        self.threshold = overlap_thresh
        self.background_label = bkg_label
        self.encode_target = encode_target
        self.use_prior_for_matching = prior_for_matching
        self.do_neg_mining = neg_mining
        self.negpos_ratio = neg_pos
        self.neg_overlap = neg_overlap
        self.variance = [0.1, 0.2]
        # bf16 input feed (kernel math stays f32); set jnp.float32 for an exact f32 path
        self.compute_dtype = compute_dtype
        # set True when the model head already emits (N, F, P) channels-first tensors —
        # removes every XLA transpose pass feeding the kernel (review item 1)
        self.predictions_transposed = predictions_transposed
        self.max_p_tile_stage1 = max_p_tile_stage1
        self.max_p_tile_stage2 = max_p_tile_stage2

    def forward(self, predictions, priors, targets):
        cls_data, loc_data, landm_data = predictions
        num = loc_data.shape[0]
        num_priors = priors.shape[0]

        if self.predictions_transposed:
            cls_p, loc_p, landm_p = cls_data, loc_data, landm_data
        else:
            tr = lambda x: jnp.transpose(x, (0, 2, 1))         # fused transpose+cast per tensor
            cls_p, loc_p, landm_p = tr(cls_data), tr(loc_data), tr(landm_data)
        cls_p = cls_p.astype(self.compute_dtype)
        loc_p = loc_p.astype(self.compute_dtype)
        landm_p = landm_p.astype(self.compute_dtype)

        loc_l, conf_l, landm_l = [], [], []
        for idx in range(num):
            l, c, lm = match(self.threshold, targets[idx][:, :4], priors,
                             self.variance, targets[idx][:, -1], targets[idx][:, 4:14])
            loc_l.append(l); conf_l.append(c); landm_l.append(lm)
        # packed (N,14,P) targets, produced directly priors-on-lanes (no transpose pass)
        tgt_p = jnp.concatenate([jnp.stack(loc_l), jnp.stack(landm_l)],
                                axis=1).astype(self.compute_dtype)
        conf_p = jnp.stack(conf_l)[:, None, :].astype(jnp.int32)          # (N,1,P)

        # pad the prior (lane) axis to a multiple of 128 so tiles stay lane-aligned
        p_pad = _round_up(num_priors, 128)
        if p_pad != num_priors:
            pw = ((0, 0), (0, 0), (0, p_pad - num_priors))
            cls_p, loc_p, landm_p = jnp.pad(cls_p, pw), jnp.pad(loc_p, pw), jnp.pad(landm_p, pw)
            tgt_p, conf_p = jnp.pad(tgt_p, pw), jnp.pad(conf_p, pw)

        # Pallas stage 1: per-prior CE (lane-dense) + masked smooth-L1 / positive-count partials
        ce, stats = multibox_stage1(cls_p, loc_p, landm_p, tgt_p, conf_p, num_priors,
                                    max_p_tile=self.max_p_tile_stage1)
        loss_l = jnp.sum(stats[:, 0])
        loss_landm = jnp.sum(stats[:, 1])
        num_pos = stats[:, 2]                        # per-image positive count (exact ints)
        num_pos_landm_total = jnp.sum(stats[:, 3])

        # Hard-negative mining: the spec's double sort (rank < num_neg over the RAW CE,
        # positives not zeroed) is replaced by a per-image CE threshold = num_neg-th
        # largest CE, from one value-only XLA sort (no argsort, no rank scatter).
        # TODO(synk): no Pallas TPU sort primitive — the threshold sort stays in XLA.
        # TODO(synk): behaviour differs from the double-sort only on exact CE ties at the
        # num_neg boundary (measure-zero for float CE).
        num_neg = jnp.minimum((self.negpos_ratio * num_pos).astype(jnp.int32),
                              num_priors - 1)
        sorted_asc = jnp.sort(ce[:, 0, :], axis=1)             # padded lanes (-1) sort first
        j = jnp.clip(p_pad - num_neg, 0, p_pad - 1)
        thresh = jnp.take_along_axis(sorted_asc, j[:, None], axis=1)[:, 0]
        thresh = jnp.where(num_neg > 0, thresh, jnp.inf).astype(jnp.float32)

        # Pallas stage 2: mined cross-entropy sum over (pos | mined-negative) priors
        loss_c = mined_ce_sum(ce, conf_p, thresh, max_p_tile=self.max_p_tile_stage2)

        N = jnp.maximum(jnp.sum(num_pos), 1.0)
        N1 = jnp.maximum(num_pos_landm_total, 1.0)
        return loss_l / N, loss_c / N, loss_landm / N1

    __call__ = forward


# ---------------------------- pure-JAX reference --------------------------- #
def reference_loss(cls_data, loc_data, landm_data, loc_t, landm_t, conf_t, negpos):
    num, num_priors, C = cls_data.shape
    sl1 = lambda x: jnp.where(jnp.abs(x) < 1.0, 0.5 * x * x, jnp.abs(x) - 0.5)
    pos1 = conf_t > 0
    N1 = jnp.maximum(jnp.sum(pos1).astype(jnp.float32), 1.0)
    loss_landm = jnp.sum(jnp.where(pos1[..., None], sl1(landm_data - landm_t), 0.0))
    pos = conf_t != 0
    loss_l = jnp.sum(jnp.where(pos[..., None], sl1(loc_data - loc_t), 0.0))
    logits = cls_data.reshape(-1, C)
    tgt = conf_t.reshape(-1)
    lse = jax.scipy.special.logsumexp(logits, axis=-1)
    ce = (lse - jnp.take_along_axis(logits, tgt[:, None], axis=1)[:, 0]).reshape(num, num_priors)
    idx_rank = jnp.argsort(jnp.argsort(-ce, axis=1), axis=1)   # torch double-sort rank
    num_pos = jnp.sum(pos.astype(jnp.int32), axis=1, keepdims=True)
    num_neg = jnp.minimum(negpos * num_pos, num_priors - 1)
    sel = jnp.logical_or(pos, idx_rank < num_neg)
    loss_c = jnp.sum(jnp.where(sel, ce, 0.0))
    N = jnp.maximum(jnp.sum(pos.astype(jnp.float32)), 1.0)
    return loss_l / N, loss_c / N, loss_landm / N1


if __name__ == "__main__":
    key = jax.random.PRNGKey(0)
    num, num_classes, num_gt = 2, 2, 3
    grid_n = 14
    num_priors = grid_n * grid_n * 2            # 392 -> exercises lane padding to 512

    xs = (jnp.arange(grid_n, dtype=jnp.float32) + 0.5) / grid_n
    gy, gx = jnp.meshgrid(xs, xs, indexing="ij")
    centers = jnp.stack([gx.ravel(), gy.ravel()], axis=-1)
    priors = jnp.concatenate([
        jnp.concatenate([centers, jnp.full((grid_n * grid_n, 2), 0.30)], axis=-1),
        jnp.concatenate([centers, jnp.full((grid_n * grid_n, 2), 0.15)], axis=-1),
    ], axis=0).astype(jnp.float32)

    k1, k2, k3, k4, k5 = jax.random.split(key, 5)
    gt_centers = jax.random.uniform(k1, (num, num_gt, 2), minval=0.3, maxval=0.7)
    boxes = jnp.concatenate([gt_centers - 0.125, gt_centers + 0.125], axis=-1)
    gt_landms = jax.random.uniform(k2, (num, num_gt, 10))
    gt_labels = jnp.ones((num, num_gt, 1), dtype=jnp.float32)
    targets = jnp.concatenate([boxes, gt_landms, gt_labels], axis=-1)   # (N, T, 15)

    cls_data = 0.5 * jax.random.normal(k3, (num, num_priors, num_classes), jnp.float32)
    loc_data = 0.5 * jax.random.normal(k4, (num, num_priors, 4), jnp.float32)
    landm_data = 0.5 * jax.random.normal(k5, (num, num_priors, 10), jnp.float32)

    # Primary instance: exact f32 path, default (large) tiles.
    crit = MultiBoxLoss(num_classes, 0.35, True, 0, True, 7, 0.35, False,
                        compute_dtype=jnp.float32)
    out = crit((cls_data, loc_data, landm_data), priors, targets)
    jax.block_until_ready(out)

    # Small-tile instance: forces pt=128 -> 4 tiles -> dual "parallel" halves (v7x core
    # split) and multi-step accumulation over the "arbitrary" prior-tile axis.
    crit_small = MultiBoxLoss(num_classes, 0.35, True, 0, True, 7, 0.35, False,
                              compute_dtype=jnp.float32,
                              max_p_tile_stage1=128, max_p_tile_stage2=128)
    out_small = crit_small((cls_data, loc_data, landm_data), priors, targets)

    # bf16-feed instance using the pre-transposed (channels-first) fast path.
    crit_bf16 = MultiBoxLoss(num_classes, 0.35, True, 0, True, 7, 0.35, False,
                             compute_dtype=jnp.bfloat16, predictions_transposed=True)
    preds_t = tuple(jnp.transpose(p, (0, 2, 1)) for p in (cls_data, loc_data, landm_data))
    out_bf16 = crit_bf16(preds_t, priors, targets)
    jax.block_until_ready((out_small, out_bf16))

    # Reference (torch double-sort mining semantics) on the same f32 inputs.
    loc_l, conf_l, landm_l = [], [], []
    for idx in range(num):
        l, c, lm = match(0.35, targets[idx][:, :4], priors, [0.1, 0.2],
                         targets[idx][:, -1], targets[idx][:, 4:14])
        loc_l.append(l.T); conf_l.append(c); landm_l.append(lm.T)
    ref = reference_loss(cls_data, loc_data, landm_data,
                         jnp.stack(loc_l), jnp.stack(landm_l), jnp.stack(conf_l), 7)

    got = np.array(out, dtype=np.float32)
    np.testing.assert_allclose(got, np.array(ref, dtype=np.float32), rtol=1e-4, atol=1e-5)
    np.testing.assert_allclose(np.array(out_small, dtype=np.float32), got,
                               rtol=1e-4, atol=1e-5)
    np.testing.assert_allclose(np.array(out_bf16, dtype=np.float32), got,
                               rtol=5e-2, atol=5e-3)
    print("KERNEL_OK")
</pallas_src>

<mosaic_0001>
module attributes {stable_mosaic.version = 11 : i64} {
  func.func @kernel(%arg0: i32, %arg1: i32, %arg2: i32, %arg3: memref<1x2x512xf32, #tpu.memory_space<vmem>>, %arg4: memref<1x4x512xf32, #tpu.memory_space<vmem>>, %arg5: memref<1x10x512xf32, #tpu.memory_space<vmem>>, %arg6: memref<1x14x512xf32, #tpu.memory_space<vmem>>, %arg7: memref<1x1x512xi32, #tpu.memory_space<vmem>>, %arg8: memref<1x1x512xf32, #tpu.memory_space<vmem>>, %arg9: memref<1x4x512xf32, #tpu.memory_space<vmem>>) attributes {dimension_semantics = [#tpu.dimension_semantics<parallel>, #tpu.dimension_semantics<parallel>, #tpu.dimension_semantics<arbitrary>], iteration_bounds = array<i64: 2, 1, 1>, scalar_prefetch = 0 : i64, scratch_operands = 0 : i64, tpu.core_type = #tpu.core_type<tc>, window_params = [{transform_indices = @transform_0, window_bounds = array<i64: 1, 2, 512>}, {transform_indices = @transform_1, window_bounds = array<i64: 1, 4, 512>}, {transform_indices = @transform_2, window_bounds = array<i64: 1, 10, 512>}, {transform_indices = @transform_3, window_bounds = array<i64: 1, 14, 512>}, {transform_indices = @transform_4, window_bounds = array<i64: 1, 1, 512>}, {transform_indices = @transform_5, window_bounds = array<i64: 1, 1, 512>}, {transform_indices = @transform_6, window_bounds = array<i64: 1, 4, 512>}]} {
    %c0 = arith.constant 0 : index
    %c0_0 = arith.constant 0 : index
    %c0_1 = arith.constant 0 : index
    %0 = vector.load %arg7[%c0, %c0_0, %c0_1] : memref<1x1x512xi32, #tpu.memory_space<vmem>>, vector<1x1x512xi32>
    %c0_i32 = arith.constant 0 : i32
    %1 = vector.broadcast %c0_i32 : i32 to vector<1x1x512xi32>
    %2 = arith.cmpi ne, %0, %1 : vector<1x1x512xi32>
    %c0_i32_2 = arith.constant 0 : i32
    %3 = vector.broadcast %c0_i32_2 : i32 to vector<1x1x512xi32>
    %4 = arith.cmpi sgt, %0, %3 : vector<1x1x512xi32>
    %c0_3 = arith.constant 0 : index
    %c0_4 = arith.constant 0 : index
    %c0_5 = arith.constant 0 : index
    %5 = vector.load %arg4[%c0_3, %c0_4, %c0_5] : memref<1x4x512xf32, #tpu.memory_space<vmem>>, vector<1x4x512xf32>
    %c0_6 = arith.constant 0 : index
    %c0_7 = arith.constant 0 : index
    %c0_8 = arith.constant 0 : index
    %6 = vector.load %arg6[%c0_6, %c0_7, %c0_8] : memref<1x14x512xf32, #tpu.memory_space<vmem>>, vector<1x4x512xf32>
    %7 = arith.subf %5, %6 : vector<1x4x512xf32>
    %8 = math.absf %7 : vector<1x4x512xf32>
    %cst = arith.constant 1.000000e+00 : f32
    %9 = vector.broadcast %cst : f32 to vector<1x4x512xf32>
    %10 = arith.cmpf olt, %8, %9 : vector<1x4x512xf32>
    %cst_9 = arith.constant 5.000000e-01 : f32
    %11 = vector.broadcast %cst_9 : f32 to vector<1x4x512xf32>
    %12 = arith.mulf %11, %7 : vector<1x4x512xf32>
    %13 = arith.mulf %12, %7 : vector<1x4x512xf32>
    %cst_10 = arith.constant 5.000000e-01 : f32
    %14 = vector.broadcast %cst_10 : f32 to vector<1x4x512xf32>
    %15 = arith.subf %8, %14 : vector<1x4x512xf32>
    %16 = arith.select %10, %13, %15 : vector<1x4x512xi1>, vector<1x4x512xf32>
    %cst_11 = arith.constant 0.000000e+00 : f32
    %17 = vector.shape_cast %2 : vector<1x1x512xi1> to vector<1x1x512xi1>
    %18 = vector.broadcast %17 : vector<1x1x512xi1> to vector<1x4x512xi1>
    %19 = vector.broadcast %cst_11 : f32 to vector<1x4x512xf32>
    %20 = arith.select %18, %16, %19 : vector<1x4x512xi1>, vector<1x4x512xf32>
    %cst_12 = arith.constant dense<0.000000e+00> : vector<1x512xf32>
    %21 = vector.multi_reduction <add>, %20, %cst_12 [1] : vector<1x4x512xf32> to vector<1x512xf32>
    %22 = vector.shape_cast %21 : vector<1x512xf32> to vector<1x1x512xf32>
    %c0_13 = arith.constant 0 : index
    %c0_14 = arith.constant 0 : index
    %c0_15 = arith.constant 0 : index
    %23 = vector.load %arg5[%c0_13, %c0_14, %c0_15] : memref<1x10x512xf32, #tpu.memory_space<vmem>>, vector<1x10x512xf32>
    %c0_16 = arith.constant 0 : index
    %c4 = arith.constant 4 : index
    %c0_17 = arith.constant 0 : index
    %24 = vector.load %arg6[%c0_16, %c4, %c0_17] : memref<1x14x512xf32, #tpu.memory_space<vmem>>, vector<1x10x512xf32>
    %25 = arith.subf %23, %24 : vector<1x10x512xf32>
    %26 = math.absf %25 : vector<1x10x512xf32>
    %cst_18 = arith.constant 1.000000e+00 : f32
    %27 = vector.broadcast %cst_18 : f32 to vector<1x10x512xf32>
    %28 = arith.cmpf olt, %26, %27 : vector<1x10x512xf32>
    %cst_19 = arith.constant 5.000000e-01 : f32
    %29 = vector.broadcast %cst_19 : f32 to vector<1x10x512xf32>
    %30 = arith.mulf %29, %25 : vector<1x10x512xf32>
    %31 = arith.mulf %30, %25 : vector<1x10x512xf32>
    %cst_20 = arith.constant 5.000000e-01 : f32
    %32 = vector.broadcast %cst_20 : f32 to vector<1x10x512xf32>
    %33 = arith.subf %26, %32 : vector<1x10x512xf32>
    %34 = arith.select %28, %31, %33 : vector<1x10x512xi1>, vector<1x10x512xf32>
    %cst_21 = arith.constant 0.000000e+00 : f32
    %35 = vector.shape_cast %4 : vector<1x1x512xi1> to vector<1x1x512xi1>
    %36 = vector.broadcast %35 : vector<1x1x512xi1> to vector<1x10x512xi1>
    %37 = vector.broadcast %cst_21 : f32 to vector<1x10x512xf32>
    %38 = arith.select %36, %34, %37 : vector<1x10x512xi1>, vector<1x10x512xf32>
    %cst_22 = arith.constant dense<0.000000e+00> : vector<1x512xf32>
    %39 = vector.multi_reduction <add>, %38, %cst_22 [1] : vector<1x10x512xf32> to vector<1x512xf32>
    %40 = vector.shape_cast %39 : vector<1x512xf32> to vector<1x1x512xf32>
    %c0_23 = arith.constant 0 : index
    %c0_24 = arith.constant 0 : index
    %c0_25 = arith.constant 0 : index
    %41 = vector.load %arg3[%c0_23, %c0_24, %c0_25] : memref<1x2x512xf32, #tpu.memory_space<vmem>>, vector<1x2x512xf32>
    %cst_26 = arith.constant dense<0xFF800000> : vector<1x512xf32>
    %42 = vector.multi_reduction <maximumf>, %41, %cst_26 [1] : vector<1x2x512xf32> to vector<1x512xf32>
    %43 = vector.shape_cast %42 : vector<1x512xf32> to vector<1x1x512xf32>
    %44 = vector.broadcast %43 : vector<1x1x512xf32> to vector<1x2x512xf32>
    %45 = arith.subf %41, %44 : vector<1x2x512xf32>
    %46 = math.exp %45 : vector<1x2x512xf32>
    %cst_27 = arith.constant dense<0.000000e+00> : vector<1x512xf32>
    %47 = vector.multi_reduction <add>, %46, %cst_27 [1] : vector<1x2x512xf32> to vector<1x512xf32>
    %48 = vector.shape_cast %47 : vector<1x512xf32> to vector<1x1x512xf32>
    %49 = math.log %48 : vector<1x1x512xf32>
    %50 = arith.addf %49, %43 : vector<1x1x512xf32>
    %51 = tpu.iota {dimensions = array<i32: 1>} : vector<1x2x512xi32>
    %52 = vector.broadcast %0 : vector<1x1x512xi32> to vector<1x2x512xi32>
    %53 = arith.cmpi eq, %51, %52 : vector<1x2x512xi32>
    %cst_28 = arith.constant 0.000000e+00 : f32
    %54 = vector.broadcast %cst_28 : f32 to vector<1x2x512xf32>
    %55 = arith.select %53, %41, %54 : vector<1x2x512xi1>, vector<1x2x512xf32>
    %cst_29 = arith.constant dense<0.000000e+00> : vector<1x512xf32>
    %56 = vector.multi_reduction <add>, %55, %cst_29 [1] : vector<1x2x512xf32> to vector<1x512xf32>
    %57 = vector.shape_cast %56 : vector<1x512xf32> to vector<1x1x512xf32>
    %58 = arith.subf %50, %57 : vector<1x1x512xf32>
    %c1_i32 = arith.constant 1 : i32
    %59 = arith.muli %arg1, %c1_i32 : i32
    %60 = arith.addi %59, %arg2 : i32
    %61 = tpu.iota {dimensions = array<i32: 2>} : vector<1x1x512xi32>
    %c512_i32 = arith.constant 512 : i32
    %62 = arith.muli %60, %c512_i32 : i32
    %63 = vector.broadcast %62 : i32 to vector<1x1x512xi32>
    %64 = arith.addi %61, %63 : vector<1x1x512xi32>
    %c392_i32 = arith.constant 392 : i32
    %65 = vector.broadcast %c392_i32 : i32 to vector<1x1x512xi32>
    %66 = arith.cmpi slt, %64, %65 : vector<1x1x512xi32>
    %cst_30 = arith.constant -1.000000e+00 : f32
    %67 = vector.broadcast %cst_30 : f32 to vector<1x1x512xf32>
    %68 = arith.select %66, %58, %67 : vector<1x1x512xi1>, vector<1x1x512xf32>
    %c0_31 = arith.constant 0 : index
    %c0_32 = arith.constant 0 : index
    %c0_33 = arith.constant 0 : index
    %69 = vector.load %arg8[%c0_31, %c0_32, %c0_33] : memref<1x1x512xf32, #tpu.memory_space<vmem>>, vector<1x1x512xf32>
    tpu.vector_store %arg8[%c0_31, %c0_32, %c0_33], %68 {strides = array<i32>} : memref<1x1x512xf32, #tpu.memory_space<vmem>>, vector<1x1x512xf32>,
    %70 = arith.extui %2 : vector<1x1x512xi1> to vector<1x1x512xi32>
    %71 = arith.sitofp %70 : vector<1x1x512xi32> to vector<1x1x512xf32>
    %72 = arith.extui %4 : vector<1x1x512xi1> to vector<1x1x512xi32>
    %73 = arith.sitofp %72 : vector<1x1x512xi32> to vector<1x1x512xf32>
    %74 = tpu.concatenate %22, %40, %71, %73 in 1 : vector<1x1x512xf32>, vector<1x1x512xf32>, vector<1x1x512xf32>, vector<1x1x512xf32> -> vector<1x4x512xf32>
    %c0_i32_34 = arith.constant 0 : i32
    %75 = arith.cmpi eq, %arg2, %c0_i32_34 : i32
    %76 = arith.extui %75 : i1 to i32
    %c0_i32_35 = arith.constant 0 : i32
    %77 = arith.cmpi ne, %76, %c0_i32_35 : i32
    scf.if %77 {
      %cst_42 = arith.constant 0.000000e+00 : f32
      %81 = vector.broadcast %cst_42 : f32 to vector<1x4x512xf32>
      %c0_43 = arith.constant 0 : index
      %c0_44 = arith.constant 0 : index
      %c0_45 = arith.constant 0 : index
      %82 = vector.load %arg9[%c0_43, %c0_44, %c0_45] : memref<1x4x512xf32, #tpu.memory_space<vmem>>, vector<1x4x512xf32>
      tpu.vector_store %arg9[%c0_43, %c0_44, %c0_45], %81 {strides = array<i32>} : memref<1x4x512xf32, #tpu.memory_space<vmem>>, vector<1x4x512xf32>,
    } else {
    }
    %c0_36 = arith.constant 0 : index
    %c0_37 = arith.constant 0 : index
    %c0_38 = arith.constant 0 : index
    %78 = vector.load %arg9[%c0_36, %c0_37, %c0_38] : memref<1x4x512xf32, #tpu.memory_space<vmem>>, vector<1x4x512xf32>
    %79 = arith.addf %78, %74 : vector<1x4x512xf32>
    %c0_39 = arith.constant 0 : index
    %c0_40 = arith.constant 0 : index
    %c0_41 = arith.constant 0 : index
    %80 = vector.load %arg9[%c0_39, %c0_40, %c0_41] : memref<1x4x512xf32, #tpu.memory_space<vmem>>, vector<1x4x512xf32>
    tpu.vector_store %arg9[%c0_39, %c0_40, %c0_41], %79 {strides = array<i32>} : memref<1x4x512xf32, #tpu.memory_space<vmem>>, vector<1x4x512xf32>,
    return
  }
  func.func @transform_0(%arg0: i32, %arg1: i32, %arg2: i32) -> (i32, i32, i32) {
    %c1_i32 = arith.constant 1 : i32
    %0 = arith.muli %arg1, %c1_i32 : i32
    %1 = arith.addi %0, %arg2 : i32
    %c0_i32 = arith.constant 0 : i32
    %c0_i32_0 = arith.constant 0 : i32
    return %arg0, %c0_i32, %1 : i32, i32, i32
  }
  func.func @transform_1(%arg0: i32, %arg1: i32, %arg2: i32) -> (i32, i32, i32) {
    %c1_i32 = arith.constant 1 : i32
    %0 = arith.muli %arg1, %c1_i32 : i32
    %1 = arith.addi %0, %arg2 : i32
    %c0_i32 = arith.constant 0 : i32
    %c0_i32_0 = arith.constant 0 : i32
    return %arg0, %c0_i32, %1 : i32, i32, i32
  }
  func.func @transform_2(%arg0: i32, %arg1: i32, %arg2: i32) -> (i32, i32, i32) {
    %c1_i32 = arith.constant 1 : i32
    %0 = arith.muli %arg1, %c1_i32 : i32
    %1 = arith.addi %0, %arg2 : i32
    %c0_i32 = arith.constant 0 : i32
    %c0_i32_0 = arith.constant 0 : i32
    return %arg0, %c0_i32, %1 : i32, i32, i32
  }
  func.func @transform_3(%arg0: i32, %arg1: i32, %arg2: i32) -> (i32, i32, i32) {
    %c1_i32 = arith.constant 1 : i32
    %0 = arith.muli %arg1, %c1_i32 : i32
    %1 = arith.addi %0, %arg2 : i32
    %c0_i32 = arith.constant 0 : i32
    %c0_i32_0 = arith.constant 0 : i32
    return %arg0, %c0_i32, %1 : i32, i32, i32
  }
  func.func @transform_4(%arg0: i32, %arg1: i32, %arg2: i32) -> (i32, i32, i32) {
    %c1_i32 = arith.constant 1 : i32
    %0 = arith.muli %arg1, %c1_i32 : i32
    %1 = arith.addi %0, %arg2 : i32
    %c0_i32 = arith.constant 0 : i32
    %c0_i32_0 = arith.constant 0 : i32
    return %arg0, %c0_i32, %1 : i32, i32, i32
  }
  func.func @transform_5(%arg0: i32, %arg1: i32, %arg2: i32) -> (i32, i32, i32) {
    %c1_i32 = arith.constant 1 : i32
    %0 = arith.muli %arg1, %c1_i32 : i32
    %1 = arith.addi %0, %arg2 : i32
    %c0_i32 = arith.constant 0 : i32
    %c0_i32_0 = arith.constant 0 : i32
    return %arg0, %c0_i32, %1 : i32, i32, i32
  }
  func.func @transform_6(%arg0: i32, %arg1: i32, %arg2: i32) -> (i32, i32, i32) {
    %c1_i32 = arith.constant 1 : i32
    %0 = arith.muli %arg0, %c1_i32 : i32
    %1 = arith.addi %0, %arg1 : i32
    %c0_i32 = arith.constant 0 : i32
    %c0_i32_0 = arith.constant 0 : i32
    %c0_i32_1 = arith.constant 0 : i32
    return %1, %c0_i32, %c0_i32_0 : i32, i32, i32
  }
}

</mosaic_0001>

<llo_original>
// kernel: tpu_custom_call.1
$region0: #{tpu_custom_call.1}
  #allocation0 [shape = 'u32[]', space=smem, size = 0x4, offset = 0x4, fixed_abs, tag = 'smem constant byte address 0x4 - core index']
  #allocation1 [shape = 'u32[72,128]{1,0:T(1,128)}', space=vmem, size = 0x9000, scoped, tag = 'internal scratch']
  %s0 = inlined_call_operand.vmem [shape: f32[2,2,512], index: 0, kind: input, shape index: {}]
  %s1 = inlined_call_operand.vmem [shape: f32[2,4,512], index: 1, kind: input, shape index: {}]
  %s2 = inlined_call_operand.vmem [shape: f32[2,10,512], index: 2, kind: input, shape index: {}]
  %s3 = inlined_call_operand.vmem [shape: f32[2,14,512], index: 3, kind: input, shape index: {}]
  %s4 = inlined_call_operand.vmem [shape: s32[2,1,512], index: 4, kind: input, shape index: {}]
  %s5 = inlined_call_operand.hbm [shape: f32[2,1,512], index: 5, kind: output, shape index: {0}]
  %s6 = inlined_call_operand.hbm [shape: f32[2,4,512], index: 6, kind: output, shape index: {1}]
  %7 = xla_tuple %s5, %s6
  %s8 = sld [smem:[#allocation0]]
  $region65: #{tpu_custom_call.1} parent=0
    _
  %s10 = ssub.s32 1, %s8
  %s11 = scalar_select 0, %s10, %s8
  $region1: #{tpu_custom_call.1} parent=0
    #allocation2 [shape = 'u8[4096]{0}', space=vmem, size = 0x1000, scoped, tag = 'output window, operand 0']
    #allocation3 [shape = 's32[2]{0}', space=sflag, size = 0x8, scoped, tag = 'scoped memory for tpu_custom_call.1']
    #allocation4 [shape = 'u8[16384]{0}', space=vmem, size = 0x4000, scoped, tag = 'output window, operand 1']
    #allocation5 [shape = 's32[2]{0}', space=sflag, size = 0x8, scoped, tag = 'scoped memory for tpu_custom_call.1']
    %12 = vsyncpa [#allocation3], 0
    %s13 = scalar_lea.sflag [#allocation3], 1
    %14 = vsyncpa %s13, 0
    %15 = vsyncpa [#allocation5], 0
    %s16 = scalar_lea.sflag [#allocation5], 1
    %17 = vsyncpa %s16, 0
    loop: start=0, step=1, limit=4
    $region2: #{tpu_custom_call.1} parent=1 // loop_pre_header
      _
    $region3: #{tpu_custom_call.1} parent=1 // loop_header
      %s19 = sphi 0, %s23
      %p20 = scmp.ge.s32.totalorder %s19, 4
      %s26 = sphi 0, %s45
      %s27 = sphi 0, %s41
      %s28 = sphi 0, %s37
      %s29 = sphi 0, %s26
      %s30 = sphi 0, %s27
      %s31 = sphi 0, %s28
      %s32 = sphi 0, %s29
      %s33 = sphi 0, %s30
      %s34 = sphi 0, %s31
      %s52 = sphi 0, %s54
      %s55 = sphi 0, %s52
      %s56 = sphi 0, %s55
      %s72 = sphi 0, %s56
      %s82 = sphi 0, %s84
      %s85 = sphi 0, %s82
      %s86 = sphi 0, %s85
      %s102 = sphi 0, %s86
      %s112 = sphi 0, %s114
      %s115 = sphi 0, %s112
      %s116 = sphi 0, %s115
      %s132 = sphi 0, %s116
      %s142 = sphi 0, %s144
      %s145 = sphi 0, %s142
      %s146 = sphi 0, %s145
      %s162 = sphi 0, %s146
      %s172 = sphi 0, %s174
      %s175 = sphi 0, %s172
      %s176 = sphi 0, %s175
      %s192 = sphi 0, %s176
      %s202 = sphi 0, %s204
      %s205 = sphi 0, %s202
      %s206 = sphi 0, %s205
      %s222 = sphi 0, %s206
      %s230 = sphi 0, %s232
      %s233 = sphi 0, %s230
      %s234 = sphi 0, %s233
      %s250 = sphi 0, %s234
    $region4: #{tpu_custom_call.1} parent=1 // loop_header_branch
      %22 = sbr.rel (%p20) target = $region8
    $region5: #{tpu_custom_call.1} parent=1 // loop_body
      %s24 = ssub.s32 %s19, 1
      %s25 = ssub.s32 %s19, 2
      %s35 = sadd.s32 1, %s28
      %p36 = scmp.ge.s32.totalorder %s35, 1
      %s37 = scalar_select %p36, 0, %s35
      %s38 = sadd.s32 1, %s27
      %s39 = scalar_select %p36, %s38, %s27
      %p40 = scmp.ge.s32.totalorder %s39, 1
      %s41 = scalar_select %p40, 0, %s39
      %s42 = sadd.s32 1, %s26
      %s43 = scalar_select %p40, %s42, %s26
      %p44 = scmp.ge.s32.totalorder %s43, 2
      %s45 = scalar_select %p44, 0, %s43
      %s46 = sadd.s32 %s27, %s28
      %s47 = sadd.s32 %s41, %s37
      %s48 = ssub.s32 %s26, %s45
      %s49 = ssub.s32 %s46, %s47
      %s50 = sor.u32 %s48, %s49
      %p51 = scmp.eq.s32.totalorder %s50, 0
      %s53 = sadd.s32 %s52, 1
      %s54 = scalar_select %p51, %s52, %s53
      %p57 = pneg %p51
      %p58 = scmp.eq.s32.totalorder %s19, 1
      %p59 = por %p57, %p58
      %p60 = scmp.ne.s32.totalorder %s52, %s55
      %p61 = scmp.eq.s32.totalorder %s19, 0
      %p62 = por %p60, %p61
      %p63 = scmp.ne.s32.totalorder %s52, %s55
      %p64 = scmp.eq.s32.totalorder %s24, 1
      %p65 = por %p63, %p64
      %p66 = scmp.ne.s32.totalorder %s55, %s56
      %p67 = scmp.eq.s32.totalorder %s24, 0
      %p68 = por %p66, %p67
      %p69 = scmp.ne.s32.totalorder %s55, %s56
      %p70 = scmp.eq.s32.totalorder %s25, 1
      %p71 = por %p69, %p70
      %p73 = scmp.ne.s32.totalorder %s56, %s72
      %p74 = scmp.eq.s32.totalorder %s25, 0
      %p75 = por %p73, %p74
      %s76 = sadd.s32 %s27, %s28
      %s77 = sadd.s32 %s41, %s37
      %s78 = ssub.s32 %s26, %s45
      %s79 = ssub.s32 %s76, %s77
      %s80 = sor.u32 %s78, %s79
      %p81 = scmp.eq.s32.totalorder %s80, 0
      %s83 = sadd.s32 %s82, 1
      %s84 = scalar_select %p81, %s82, %s83
      %p87 = pneg %p81
      %p88 = scmp.eq.s32.totalorder %s19, 1
      %p89 = por %p87, %p88
      %p90 = scmp.ne.s32.totalorder %s82, %s85
      %p91 = scmp.eq.s32.totalorder %s19, 0
      %p92 = por %p90, %p91
      %p93 = scmp.ne.s32.totalorder %s82, %s85
      %p94 = scmp.eq.s32.totalorder %s24, 1
      %p95 = por %p93, %p94
      %p96 = scmp.ne.s32.totalorder %s85, %s86
      %p97 = scmp.eq.s32.totalorder %s24, 0
      %p98 = por %p96, %p97
      %p99 = scmp.ne.s32.totalorder %s85, %s86
      %p100 = scmp.eq.s32.totalorder %s25, 1
      %p101 = por %p99, %p100
      %p103 = scmp.ne.s32.totalorder %s86, %s102
      %p104 = scmp.eq.s32.totalorder %s25, 0
      %p105 = por %p103, %p104
      %s106 = sadd.s32 %s27, %s28
      %s107 = sadd.s32 %s41, %s37
      %s108 = ssub.s32 %s26, %s45
      %s109 = ssub.s32 %s106, %s107
      %s110 = sor.u32 %s108, %s109
      %p111 = scmp.eq.s32.totalorder %s110, 0
      %s113 = sadd.s32 %s112, 1
      %s114 = scalar_select %p111, %s112, %s113
      %p117 = pneg %p111
      %p118 = scmp.eq.s32.totalorder %s19, 1
      %p119 = por %p117, %p118
      %p120 = scmp.ne.s32.totalorder %s112, %s115
      %p121 = scmp.eq.s32.totalorder %s19, 0
      %p122 = por %p120, %p121
      %p123 = scmp.ne.s32.totalorder %s112, %s115
      %p124 = scmp.eq.s32.totalorder %s24, 1
      %p125 = por %p123, %p124
      %p126 = scmp.ne.s32.totalorder %s115, %s116
      %p127 = scmp.eq.s32.totalorder %s24, 0
      %p128 = por %p126, %p127
      %p129 = scmp.ne.s32.totalorder %s115, %s116
      %p130 = scmp.eq.s32.totalorder %s25, 1
      %p131 = por %p129, %p130
      %p133 = scmp.ne.s32.totalorder %s116, %s132
      %p134 = scmp.eq.s32.totalorder %s25, 0
      %p135 = por %p133, %p134
      %s136 = sadd.s32 %s27, %s28
      %s137 = sadd.s32 %s41, %s37
      %s138 = ssub.s32 %s26, %s45
      %s139 = ssub.s32 %s136, %s137
      %s140 = sor.u32 %s138, %s139
      %p141 = scmp.eq.s32.totalorder %s140, 0
      %s143 = sadd.s32 %s142, 1
      %s144 = scalar_select %p141, %s142, %s143
      %p147 = pneg %p141
      %p148 = scmp.eq.s32.totalorder %s19, 1
      %p149 = por %p147, %p148
      %p150 = scmp.ne.s32.totalorder %s142, %s145
      %p151 = scmp.eq.s32.totalorder %s19, 0
      %p152 = por %p150, %p151
      %p153 = scmp.ne.s32.totalorder %s142, %s145
      %p154 = scmp.eq.s32.totalorder %s24, 1
      %p155 = por %p153, %p154
      %p156 = scmp.ne.s32.totalorder %s145, %s146
      %p157 = scmp.eq.s32.totalorder %s24, 0
      %p158 = por %p156, %p157
      %p159 = scmp.ne.s32.totalorder %s145, %s146
      %p160 = scmp.eq.s32.totalorder %s25, 1
      %p161 = por %p159, %p160
      %p163 = scmp.ne.s32.totalorder %s146, %s162
      %p164 = scmp.eq.s32.totalorder %s25, 0
      %p165 = por %p163, %p164
      %s166 = sadd.s32 %s27, %s28
      %s167 = sadd.s32 %s41, %s37
      %s168 = ssub.s32 %s26, %s45
      %s169 = ssub.s32 %s166, %s167
      %s170 = sor.u32 %s168, %s169
      %p171 = scmp.eq.s32.totalorder %s170, 0
      %s173 = sadd.s32 %s172, 1
      %s174 = scalar_select %p171, %s172, %s173
      %p177 = pneg %p171
      %p178 = scmp.eq.s32.totalorder %s19, 1
      %p179 = por %p177, %p178
      %p180 = scmp.ne.s32.totalorder %s172, %s175
      %p181 = scmp.eq.s32.totalorder %s19, 0
      %p182 = por %p180, %p181
      %p183 = scmp.ne.s32.totalorder %s172, %s175
      %p184 = scmp.eq.s32.totalorder %s24, 1
      %p185 = por %p183, %p184
      %p186 = scmp.ne.s32.totalorder %s175, %s176
      %p187 = scmp.eq.s32.totalorder %s24, 0
      %p188 = por %p186, %p187
      %p189 = scmp.ne.s32.totalorder %s175, %s176
      %p190 = scmp.eq.s32.totalorder %s25, 1
      %p191 = por %p189, %p190
      %p193 = scmp.ne.s32.totalorder %s176, %s192
      %p194 = scmp.eq.s32.totalorder %s25, 0
      %p195 = por %p193, %p194
      %s196 = sadd.s32 %s27, %s28
      %s197 = sadd.s32 %s41, %s37
      %s198 = ssub.s32 %s26, %s45
      %s199 = ssub.s32 %s196, %s197
      %s200 = sor.u32 %s198, %s199
      %p201 = scmp.eq.s32.totalorder %s200, 0
      %s203 = sadd.s32 %s202, 1
      %s204 = scalar_select %p201, %s202, %s203
      %p207 = pneg %p201
      %p208 = scmp.eq.s32.totalorder %s19, 1
      %p209 = por %p207, %p208
      %p210 = scmp.ne.s32.totalorder %s202, %s205
      %p211 = scmp.eq.s32.totalorder %s19, 0
      %p212 = por %p210, %p211
      %p213 = scmp.ne.s32.totalorder %s202, %s205
      %p214 = scmp.eq.s32.totalorder %s24, 1
      %p215 = por %p213, %p214
      %p216 = scmp.ne.s32.totalorder %s205, %s206
      %p217 = scmp.eq.s32.totalorder %s24, 0
      %p218 = por %p216, %p217
      %p219 = scmp.ne.s32.totalorder %s205, %s206
      %p220 = scmp.eq.s32.totalorder %s25, 1
      %p221 = por %p219, %p220
      %p223 = scmp.ne.s32.totalorder %s206, %s222
      %p224 = scmp.eq.s32.totalorder %s25, 0
      %p225 = por %p223, %p224
      %s226 = sadd.s32 %s26, %s27
      %s227 = sadd.s32 %s45, %s41
      %s228 = ssub.s32 %s226, %s227
      %p229 = scmp.eq.s32.totalorder %s228, 0
      %s231 = sadd.s32 %s230, 1
      %s232 = scalar_select %p229, %s230, %s231
      %p235 = pneg %p229
      %p236 = scmp.eq.s32.totalorder %s19, 1
      %p237 = por %p235, %p236
      %p238 = scmp.ne.s32.totalorder %s230, %s233
      %p239 = scmp.eq.s32.totalorder %s19, 0
      %p240 = por %p238, %p239
      %p241 = scmp.ne.s32.totalorder %s230, %s233
      %p242 = scmp.eq.s32.totalorder %s24, 1
      %p243 = por %p241, %p242
      %p244 = scmp.ne.s32.totalorder %s233, %s234
      %p245 = scmp.eq.s32.totalorder %s24, 0
      %p246 = por %p244, %p245
      %p247 = scmp.ne.s32.totalorder %s233, %s234
      %p248 = scmp.eq.s32.totalorder %s25, 1
      %p249 = por %p247, %p248
      %p251 = scmp.ne.s32.totalorder %s234, %s250
      %p252 = scmp.eq.s32.totalorder %s25, 0
      %p253 = por %p251, %p252
      %p254 = scmp.le.s32.totalorder 1, %s19
      %p255 = scmp.lt.s32.totalorder %s19, 3
      %p256 = pnand %p254, %p255
      %p257 = pneg %p256
      // Predicated region
      $region9: #{tpu_custom_call.1} parent=5 // pred_check
        _
      $region10: #{tpu_custom_call.1} parent=5 // pred_check_branch
        %259 = sbr.rel (%p256) target = $region12
      $region11: #{tpu_custom_call.1} parent=5 // pred_region
        %s260 = ssub.s32 %s19, 1
      $region12: #{tpu_custom_call.1} parent=5 // pred_fallthru
        _
      %p261 = scmp.lt.s32.totalorder %s19, 2
      // Predicated region
      $region13: #{tpu_custom_call.1} parent=5 // pred_check
        %p262 = pneg %p261
      $region14: #{tpu_custom_call.1} parent=5 // pred_check_branch
        %264 = sbr.rel (%p262) target = $region16
      $region15: #{tpu_custom_call.1} parent=5 // pred_region
        // Predicated region
        $region17: #{tpu_custom_call.1} parent=15 // pred_check
          %p265 = pneg %p62
        $region18: #{tpu_custom_call.1} parent=15 // pred_check_branch
          %267 = sbr.rel (%p265) target = $region20
        $region19: #{tpu_custom_call.1} parent=15 // pred_region
          %s268 = sadd.s32 %s27, %s28
          %s269 = smul.u32 4, %s268
          %p270 = scmp.lt.s32.totalorder %s26, 1
          %s271 = scalar_select %p270, %s26, 1
          %p272 = scmp.lt.s32.totalorder %s269, 3
          %s273 = scalar_select %p272, %s269, 3
          %s274 = smul.addr %s271, 4
          %s275 = sadd.s32 %s273, %s274
          %s276 = smul.addr %s275, 2
          %s277 = scalar_lea.vmem %s0, %s276
          %s278 = sadd.s32 %s27, %s28
          %s279 = smul.u32 4, %s278
        $region20: #{tpu_custom_call.1} parent=15 // pred_fallthru
          _
        // Predicated region
        $region21: #{tpu_custom_call.1} parent=15 // pred_check
          %p280 = pneg %p92
        $region22: #{tpu_custom_call.1} parent=15 // pred_check_branch
          %282 = sbr.rel (%p280) target = $region24
        $region23: #{tpu_custom_call.1} parent=15 // pred_region
          %s283 = sadd.s32 %s27, %s28
          %s284 = smul.u32 4, %s283
          %p285 = scmp.lt.s32.totalorder %s26, 1
          %s286 = scalar_select %p285, %s26, 1
          %p287 = scmp.lt.s32.totalorder %s284, 3
          %s288 = scalar_select %p287, %s284, 3
          %s289 = smul.addr %s286, 4
          %s290 = sadd.s32 %s288, %s289
          %s291 = smul.addr %s290, 4
          %s292 = scalar_lea.vmem %s1, %s291
          %s293 = sadd.s32 %s27, %s28
          %s294 = smul.u32 4, %s293
        $region24: #{tpu_custom_call.1} parent=15 // pred_fallthru
          _
        // Predicated region
        $region25: #{tpu_custom_call.1} parent=15 // pred_check
          %p295 = pneg %p122
        $region26: #{tpu_custom_call.1} parent=15 // pred_check_branch
          %297 = sbr.rel (%p295) target = $region28
        $region27: #{tpu_custom_call.1} parent=15 // pred_region
          %s298 = sadd.s32 %s27, %s28
          %s299 = smul.u32 4, %s298
          %p300 = scmp.lt.s32.totalorder %s26, 1
          %s301 = scalar_select %p300, %s26, 1
          %p302 = scmp.lt.s32.totalorder %s299, 3
          %s303 = scalar_select %p302, %s299, 3
          %s304 = smul.addr %s301, 8
          %s305 = sadd.s32 %s303, %s304
          %s306 = smul.addr %s305, 8
          %s307 = scalar_lea.vmem %s2, %s306
          %s308 = sadd.s32 %s27, %s28
          %s309 = smul.u32 4, %s308
        $region28: #{tpu_custom_call.1} parent=15 // pred_fallthru
          _
        // Predicated region
        $region29: #{tpu_custom_call.1} parent=15 // pred_check
          %p310 = pneg %p152
        $region30: #{tpu_custom_call.1} parent=15 // pred_check_branch
          %312 = sbr.rel (%p310) target = $region32
        $region31: #{tpu_custom_call.1} parent=15 // pred_region
          %s313 = sadd.s32 %s27, %s28
          %s314 = smul.u32 4, %s313
          %p315 = scmp.lt.s32.totalorder %s26, 1
          %s316 = scalar_select %p315, %s26, 1
          %p317 = scmp.lt.s32.totalorder %s314, 3
          %s318 = scalar_select %p317, %s314, 3
          %s319 = smul.addr %s316, 8
          %s320 = sadd.s32 %s318, %s319
          %s321 = smul.addr %s320, 8
          %s322 = scalar_lea.vmem %s3, %s321
          %s323 = sadd.s32 %s27, %s28
          %s324 = smul.u32 4, %s323
        $region32: #{tpu_custom_call.1} parent=15 // pred_fallthru
          _
        // Predicated region
        $region33: #{tpu_custom_call.1} parent=15 // pred_check
          %p325 = pneg %p182
        $region34: #{tpu_custom_call.1} parent=15 // pred_check_branch
          %327 = sbr.rel (%p325) target = $region36
        $region35: #{tpu_custom_call.1} parent=15 // pred_region
          %s328 = sadd.s32 %s27, %s28
          %s329 = smul.u32 4, %s328
          %p330 = scmp.lt.s32.totalorder %s26, 1
          %s331 = scalar_select %p330, %s26, 1
          %p332 = scmp.lt.s32.totalorder %s329, 3
          %s333 = scalar_select %p332, %s329, 3
          %s334 = smul.addr %s331, 4
          %s335 = sadd.s32 %s333, %s334
          %s336 = scalar_lea.vmem %s4, %s335
          %s337 = sadd.s32 %s27, %s28
          %s338 = smul.u32 4, %s337
        $region36: #{tpu_custom_call.1} parent=15 // pred_fallthru
          _
      $region16: #{tpu_custom_call.1} parent=5 // pred_fallthru
        _
      %p339 = scmp.le.s32.totalorder 1, %s19
      %p340 = scmp.lt.s32.totalorder %s19, 3
      %p341 = pnand %p339, %p340
      %p342 = pneg %p341
      // Predicated region
      $region37: #{tpu_custom_call.1} parent=5 // pred_check
        _
      $region38: #{tpu_custom_call.1} parent=5 // pred_check_branch
        %344 = sbr.rel (%p341) target = $region40
      $region39: #{tpu_custom_call.1} parent=5 // pred_region
        %s345 = ssub.s32 %s19, 1
        %s346 = sadd.s32 %s30, %s31
        %s347 = smul.u32 4, %s346
        %p348 = scmp.lt.s32.totalorder %s29, 1
        %s349 = scalar_select %p348, %s29, 1
        %p350 = scmp.lt.s32.totalorder %s347, 3
        %s351 = scalar_select %p350, %s347, 3
        %s352 = smul.addr %s349, 4
        %s353 = sadd.s32 %s351, %s352
        %s354 = smul.addr %s353, 2
        %s355 = scalar_lea.vmem %s0, %s354
        %p356 = pneg %p68
        %p357 = pneg %p65
        %s358 = sadd.s32 %s30, %s31
        %s359 = smul.u32 4, %s358
        %p360 = scmp.lt.s32.totalorder %s29, 1
        %s361 = scalar_select %p360, %s29, 1
        %p362 = scmp.lt.s32.totalorder %s359, 3
        %s363 = scalar_select %p362, %s359, 3
        %s364 = smul.addr %s361, 4
        %s365 = sadd.s32 %s363, %s364
        %s366 = smul.addr %s365, 4
        %s367 = scalar_lea.vmem %s1, %s366
        %p368 = pneg %p98
        %p369 = pneg %p95
        %s370 = sadd.s32 %s30, %s31
        %s371 = smul.u32 4, %s370
        %p372 = scmp.lt.s32.totalorder %s29, 1
        %s373 = scalar_select %p372, %s29, 1
        %p374 = scmp.lt.s32.totalorder %s371, 3
        %s375 = scalar_select %p374, %s371, 3
        %s376 = smul.addr %s373, 8
        %s377 = sadd.s32 %s375, %s376
        %s378 = smul.addr %s377, 8
        %s379 = scalar_lea.vmem %s2, %s378
        %p380 = pneg %p128
        %p381 = pneg %p125
        %s382 = sadd.s32 %s30, %s31
        %s383 = smul.u32 4, %s382
        %p384 = scmp.lt.s32.totalorder %s29, 1
        %s385 = scalar_select %p384, %s29, 1
        %p386 = scmp.lt.s32.totalorder %s383, 3
        %s387 = scalar_select %p386, %s383, 3
        %s388 = smul.addr %s385, 8
        %s389 = sadd.s32 %s387, %s388
        %s390 = smul.addr %s389, 8
        %s391 = scalar_lea.vmem %s3, %s390
        %p392 = pneg %p158
        %p393 = pneg %p155
        %s394 = sadd.s32 %s30, %s31
        %s395 = smul.u32 4, %s394
        %p396 = scmp.lt.s32.totalorder %s29, 1
        %s397 = scalar_select %p396, %s29, 1
        %p398 = scmp.lt.s32.totalorder %s395, 3
        %s399 = scalar_select %p398, %s395, 3
        %s400 = smul.addr %s397, 4
        %s401 = sadd.s32 %s399, %s400
        %s402 = scalar_lea.vmem %s4, %s401
        %p403 = pneg %p188
        %p404 = pneg %p185
        %p405 = pneg %p218
        %p406 = pneg %p215
        %s407 = sand.u32 %s205, 1
        %s408 = scalar_lea.sflag [#allocation3], %s407
        %s409 = sand.u32 %s205, 1
        %s410 = smul.addr %s409, 4
        %s411 = scalar_lea.vmem [#allocation2], %s410
        %p412 = pneg %p246
        %p413 = pneg %p243
        %s414 = sand.u32 %s233, 1
        %s415 = scalar_lea.sflag [#allocation5], %s414
        %s416 = sand.u32 %s233, 1
        %s417 = smul.addr %s416, 16
        %s418 = scalar_lea.vmem [#allocation4], %s417
        %s419 = sadd.s32 %s30, %s31
        %s420 = smul.u32 4, %s419
        %p421 = scmp.lt.s32.totalorder %s29, 1
        %s422 = scalar_select %p421, %s29, 1
        %p423 = scmp.lt.s32.totalorder %s420, 3
        %s424 = scalar_select %p423, %s420, 3
        %s425 = smul.addr %s422, 4
        %s426 = sadd.s32 %s424, %s425
        %s427 = smul.addr %s426, 2
        %s428 = scalar_lea.vmem %s0, %s427
        %s429 = sadd.s32 %s30, %s31
        %s430 = smul.u32 4, %s429
        %s431 = sadd.s32 %s30, %s31
        %s432 = smul.u32 4, %s431
        %p433 = scmp.lt.s32.totalorder %s29, 1
        %s434 = scalar_select %p433, %s29, 1
        %p435 = scmp.lt.s32.totalorder %s432, 3
        %s436 = scalar_select %p435, %s432, 3
        %s437 = smul.addr %s434, 4
        %s438 = sadd.s32 %s436, %s437
        %s439 = smul.addr %s438, 4
        %s440 = scalar_lea.vmem %s1, %s439
        %s441 = sadd.s32 %s30, %s31
        %s442 = smul.u32 4, %s441
        %s443 = sadd.s32 %s30, %s31
        %s444 = smul.u32 4, %s443
        %p445 = scmp.lt.s32.totalorder %s29, 1
        %s446 = scalar_select %p445, %s29, 1
        %p447 = scmp.lt.s32.totalorder %s444, 3
        %s448 = scalar_select %p447, %s444, 3
        %s449 = smul.addr %s446, 8
        %s450 = sadd.s32 %s448, %s449
        %s451 = smul.addr %s450, 8
        %s452 = scalar_lea.vmem %s2, %s451
        %s453 = sadd.s32 %s30, %s31
        %s454 = smul.u32 4, %s453
        %s455 = sadd.s32 %s30, %s31
        %s456 = smul.u32 4, %s455
        %p457 = scmp.lt.s32.totalorder %s29, 1
        %s458 = scalar_select %p457, %s29, 1
        %p459 = scmp.lt.s32.totalorder %s456, 3
        %s460 = scalar_select %p459, %s456, 3
        %s461 = smul.addr %s458, 8
        %s462 = sadd.s32 %s460, %s461
        %s463 = smul.addr %s462, 8
        %s464 = scalar_lea.vmem %s3, %s463
        %s465 = sadd.s32 %s30, %s31
        %s466 = smul.u32 4, %s465
        %s467 = sadd.s32 %s30, %s31
        %s468 = smul.u32 4, %s467
        %p469 = scmp.lt.s32.totalorder %s29, 1
        %s470 = scalar_select %p469, %s29, 1
        %p471 = scmp.lt.s32.totalorder %s468, 3
        %s472 = scalar_select %p471, %s468, 3
        %s473 = smul.addr %s470, 4
        %s474 = sadd.s32 %s472, %s473
        %s475 = scalar_lea.vmem %s4, %s474
        %s476 = sadd.s32 %s30, %s31
        %s477 = smul.u32 4, %s476
        %s478 = sadd.s32 %s30, %s31
        %s479 = smul.u32 4, %s478
        %s480 = sadd.s32 %s29, %s30
        %v481 = vld [vmem:[%s475] sm:$0xf]
        %vm482 = vcmp.ne.s32.totalorder %v481, 0
        %vm483 = vcmp.gt.s32.totalorder %v481, 0
        %v484 = vld [vmem:[%s440] sm:$0xff]
        %v485 = vld [vmem:[%s440 + $0x8] sm:$0xff]
        %v486 = vld [vmem:[%s464] sm:$0xf]
        %v487 = vld [vmem:[%s464 + $0x8] sm:$0xf]
        %v488 = vld [vmem:[%s464 + $0x10] sm:$0xf]
        %v489 = vld [vmem:[%s464 + $0x18] sm:$0xf]
        %v494 = vrot.slane %v487, 4
        %v495 = vrot.slane %v489, 4
        %vm496 = vcmask 1043456
        %v497 = vsel %vm496, %v486, %v494
        %v498 = vsel %vm496, %v488, %v495
        %v501 = vsub.f32 %v484, %v497
        %v502 = vsub.f32 %v485, %v498
        %v503 = vand.u32 2147483647, %v501
        %v504 = vand.u32 2147483647, %v502
        %vm505 = vcmp.lt.f32.partialorder %v503, 1.0
        %vm506 = vcmp.lt.f32.partialorder %v504, 1.0
        %v507 = vmul.f32 %v501, 0.5
        %v508 = vmul.f32 %v502, 0.5
        %v509 = vmul.f32 %v507, %v501
        %v510 = vmul.f32 %v508, %v502
        %v511 = vsub.f32 %v503, 0.5
        %v512 = vsub.f32 %v504, 0.5
        %v513 = vsel %vm505, %v509, %v511
        %v514 = vsel %vm506, %v510, %v512
        %v515 = vsel %vm482, 1, 0
        %v516 = vperm.slane %v515, 0
        %v517 = vperm.slane %v515, 1
        %v518 = vperm.slane %v515, 2
        %v519 = vperm.slane %v515, 3
        %vm520 = vcmp.eq.s32.totalorder %v516, 1
        %vm521 = vcmp.eq.s32.totalorder %v517, 1
        %vm522 = vcmp.eq.s32.totalorder %v518, 1
        %vm523 = vcmp.eq.s32.totalorder %v519, 1
        %526 = vst [vmem:[#allocation1] ss:$2 sm:$0xff] %v513
        %s527 = scalar_lea.vmem [#allocation1], 16
        %528 = vst [vmem:[%s527] ss:$2 sm:$0xff] %v514
        %v529 = vld.sshfl [vmem:[#allocation1] sm:$0xff pattern:$0x75316420]
        %v530 = vld.sshfl [vmem:[#allocation1 + $0x8] sm:$0xff pattern:$0x75316420]
        %v531 = vld.sshfl [vmem:[#allocation1 + $0x10] sm:$0xff pattern:$0x75316420]
        %v532 = vld.sshfl [vmem:[#allocation1 + $0x18] sm:$0xff pattern:$0x75316420]
        %v537 = vsel %vm520, %v529, 0.0
        %v538 = vsel %vm521, %v530, 0.0
        %v539 = vsel %vm522, %v531, 0.0
        %v540 = vsel %vm523, %v532, 0.0
        %v541 = vsel %vm496, %v537, 0.0
        %v542 = vrot.slane %v541, 4
        %v543 = vadd.f32 %v541, %v542
        %v544 = vrot.slane %v543, 2
        %v545 = vadd.f32 %v543, %v544
        %v546 = vrot.slane %v545, 1
        %v547 = vadd.f32 %v545, %v546
        %v548 = vsel %vm496, %v538, 0.0
        %v549 = vrot.slane %v548, 4
        %v550 = vadd.f32 %v548, %v549
        %v551 = vrot.slane %v550, 2
        %v552 = vadd.f32 %v550, %v551
        %v553 = vrot.slane %v552, 1
        %v554 = vadd.f32 %v552, %v553
        %v555 = vsel %vm496, %v539, 0.0
        %v556 = vrot.slane %v555, 4
        %v557 = vadd.f32 %v555, %v556
        %v558 = vrot.slane %v557, 2
        %v559 = vadd.f32 %v557, %v558
        %v560 = vrot.slane %v559, 1
        %v561 = vadd.f32 %v559, %v560
        %v562 = vsel %vm496, %v540, 0.0
        %v563 = vrot.slane %v562, 4
        %v564 = vadd.f32 %v562, %v563
        %v565 = vrot.slane %v564, 2
        %v566 = vadd.f32 %v564, %v565
        %v567 = vrot.slane %v566, 1
        %v568 = vadd.f32 %v566, %v567
        %v569 = vld [vmem:[%s452] sm:$0xff]
        %v570 = vld [vmem:[%s452 + $0x8] sm:$0xff]
        %v571 = vld [vmem:[%s452 + $0x10] sm:$0xff]
        %v572 = vld [vmem:[%s452 + $0x18] sm:$0xff]
        %v573 = vld [vmem:[%s452 + $0x20] sm:$0x3]
        %v574 = vld [vmem:[%s452 + $0x28] sm:$0x3]
        %v575 = vld [vmem:[%s452 + $0x30] sm:$0x3]
        %v576 = vld [vmem:[%s452 + $0x38] sm:$0x3]
        %v577 = vld [vmem:[%s464] sm:$0xf0]
        %v578 = vld [vmem:[%s464 + $0x8] sm:$0xf0]
        %v579 = vld [vmem:[%s464 + $0x10] sm:$0xf0]
        %v580 = vld [vmem:[%s464 + $0x18] sm:$0xf0]
        %v581 = vld [vmem:[%s464 + $0x20] sm:$0x3f]
        %v582 = vld [vmem:[%s464 + $0x28] sm:$0x3f]
        %v583 = vld [vmem:[%s464 + $0x30] sm:$0x3f]
        %v584 = vld [vmem:[%s464 + $0x38] sm:$0x3f]
        %v593 = vrot.slane %v577, 4
        %v594 = vrot.slane %v581, 4
        %v595 = vsel %vm496, %v593, %v594
        %v596 = vrot.slane %v578, 4
        %v597 = vrot.slane %v582, 4
        %v598 = vsel %vm496, %v596, %v597
        %v599 = vrot.slane %v579, 4
        %v600 = vrot.slane %v583, 4
        %v601 = vsel %vm496, %v599, %v600
        %v602 = vrot.slane %v580, 4
        %v603 = vrot.slane %v584, 4
        %v604 = vsel %vm496, %v602, %v603
        %v613 = vsub.f32 %v569, %v595
        %v614 = vsub.f32 %v570, %v598
        %v615 = vsub.f32 %v571, %v601
        %v616 = vsub.f32 %v572, %v604
        %v617 = vsub.f32 %v573, %v594
        %v618 = vsub.f32 %v574, %v597
        %v619 = vsub.f32 %v575, %v600
        %v620 = vsub.f32 %v576, %v603
        %v621 = vand.u32 2147483647, %v613
        %v622 = vand.u32 2147483647, %v614
        %v623 = vand.u32 2147483647, %v615
        %v624 = vand.u32 2147483647, %v616
        %v625 = vand.u32 2147483647, %v617
        %v626 = vand.u32 2147483647, %v618
        %v627 = vand.u32 2147483647, %v619
        %v628 = vand.u32 2147483647, %v620
        %vm629 = vcmp.lt.f32.partialorder %v621, 1.0
        %vm630 = vcmp.lt.f32.partialorder %v622, 1.0
        %vm631 = vcmp.lt.f32.partialorder %v623, 1.0
        %vm632 = vcmp.lt.f32.partialorder %v624, 1.0
        %vm633 = vcmp.lt.f32.partialorder %v625, 1.0
        %vm634 = vcmp.lt.f32.partialorder %v626, 1.0
        %vm635 = vcmp.lt.f32.partialorder %v627, 1.0
        %vm636 = vcmp.lt.f32.partialorder %v628, 1.0
        %v637 = vmul.f32 %v613, 0.5
        %v638 = vmul.f32 %v614, 0.5
        %v639 = vmul.f32 %v615, 0.5
        %v640 = vmul.f32 %v616, 0.5
        %v641 = vmul.f32 %v617, 0.5
        %v642 = vmul.f32 %v618, 0.5
        %v643 = vmul.f32 %v619, 0.5
        %v644 = vmul.f32 %v620, 0.5
        %v645 = vmul.f32 %v637, %v613
        %v646 = vmul.f32 %v638, %v614
        %v647 = vmul.f32 %v639, %v615
        %v648 = vmul.f32 %v640, %v616
        %v649 = vmul.f32 %v641, %v617
        %v650 = vmul.f32 %v642, %v618
        %v651 = vmul.f32 %v643, %v619
        %v652 = vmul.f32 %v644, %v620
        %v653 = vsub.f32 %v621, 0.5
        %v654 = vsub.f32 %v622, 0.5
        %v655 = vsub.f32 %v623, 0.5
        %v656 = vsub.f32 %v624, 0.5
        %v657 = vsub.f32 %v625, 0.5
        %v658 = vsub.f32 %v626, 0.5
        %v659 = vsub.f32 %v627, 0.5
        %v660 = vsub.f32 %v628, 0.5
        %v661 = vsel %vm629, %v645, %v653
        %v662 = vsel %vm630, %v646, %v654
        %v663 = vsel %vm631, %v647, %v655
        %v664 = vsel %vm632, %v648, %v656
        %v665 = vsel %vm633, %v649, %v657
        %v666 = vsel %vm634, %v650, %v658
        %v667 = vsel %vm635, %v651, %v659
        %v668 = vsel %vm636, %v652, %v660
        %v669 = vsel %vm483, 1, 0
        %v670 = vperm.slane %v669, 0
        %v671 = vperm.slane %v669, 1
        %v672 = vperm.slane %v669, 2
        %v673 = vperm.slane %v669, 3
        %vm674 = vcmp.eq.s32.totalorder %v670, 1
        %vm675 = vcmp.eq.s32.totalorder %v671, 1
        %vm676 = vcmp.eq.s32.totalorder %v672, 1
        %vm677 = vcmp.eq.s32.totalorder %v673, 1
        %v678 = vsel %vm674, %v661, 0.0
        %v679 = vsel %vm675, %v662, 0.0
        %v680 = vsel %vm676, %v663, 0.0
        %v681 = vsel %vm677, %v664, 0.0
        %v682 = vsel %vm674, %v665, 0.0
        %v683 = vsel %vm675, %v666, 0.0
        %v684 = vsel %vm676, %v667, 0.0
        %v685 = vsel %vm677, %v668, 0.0
        %vm686 = vcmask 1041408
        %v687 = vsel %vm686, %v682, 0.0
        %v688 = vadd.f32 %v678, %v687
        %v689 = vrot.slane %v688, 4
        %v690 = vadd.f32 %v688, %v689
        %v691 = vrot.slane %v690, 2
        %v692 = vadd.f32 %v690, %v691
        %v693 = vrot.slane %v692, 1
        %v694 = vadd.f32 %v692, %v693
        %v695 = vsel %vm686, %v683, 0.0
        %v696 = vadd.f32 %v679, %v695
        %v697 = vrot.slane %v696, 4
        %v698 = vadd.f32 %v696, %v697
        %v699 = vrot.slane %v698, 2
        %v700 = vadd.f32 %v698, %v699
        %v701 = vrot.slane %v700, 1
        %v702 = vadd.f32 %v700, %v701
        %v703 = vsel %vm686, %v684, 0.0
        %v704 = vadd.f32 %v680, %v703
        %v705 = vrot.slane %v704, 4
        %v706 = vadd.f32 %v704, %v705
        %v707 = vrot.slane %v706, 2
        %v708 = vadd.f32 %v706, %v707
        %v709 = vrot.slane %v708, 1
        %v710 = vadd.f32 %v708, %v709
        %v711 = vsel %vm686, %v685, 0.0
        %v712 = vadd.f32 %v681, %v711
        %v713 = vrot.slane %v712, 4
        %v714 = vadd.f32 %v712, %v713
        %v715 = vrot.slane %v714, 2
        %v716 = vadd.f32 %v714, %v715
        %v717 = vrot.slane %v716, 1
        %v718 = vadd.f32 %v716, %v717
        %v719 = vld [vmem:[%s428] sm:$0xff]
        %721 = vst [vmem:[#allocation1] ss:$4 sm:$0xff] %v719
        %v722 = vld.sshfl [vmem:[#allocation1] sm:$0xff pattern:$0x73625140]
        %v723 = vld.sshfl [vmem:[#allocation1 + $0x8] sm:$0xff pattern:$0x73625140]
        %v724 = vld.sshfl [vmem:[#allocation1 + $0x10] sm:$0xff pattern:$0x73625140]
        %v725 = vld.sshfl [vmem:[#allocation1 + $0x18] sm:$0xff pattern:$0x73625140]
        %v730 = vsel %vm686, %v722, -inf
        %v731 = vrot.slane %v730, 4
        %v732 = vmax.f32 %v730, %v731
        %v733 = vrot.slane %v732, 2
        %v734 = vmax.f32 %v732, %v733
        %v735 = vrot.slane %v734, 1
        %v736 = vmax.f32 %v734, %v735
        %v737 = vsel %vm686, %v723, -inf
        %v738 = vrot.slane %v737, 4
        %v739 = vmax.f32 %v737, %v738
        %v740 = vrot.slane %v739, 2
        %v741 = vmax.f32 %v739, %v740
        %v742 = vrot.slane %v741, 1
        %v743 = vmax.f32 %v741, %v742
        %v744 = vsel %vm686, %v724, -inf
        %v745 = vrot.slane %v744, 4
        %v746 = vmax.f32 %v744, %v745
        %v747 = vrot.slane %v746, 2
        %v748 = vmax.f32 %v746, %v747
        %v749 = vrot.slane %v748, 1
        %v750 = vmax.f32 %v748, %v749
        %v751 = vsel %vm686, %v725, -inf
        %v752 = vrot.slane %v751, 4
        %v753 = vmax.f32 %v751, %v752
        %v754 = vrot.slane %v753, 2
        %v755 = vmax.f32 %v753, %v754
        %v756 = vrot.slane %v755, 1
        %v757 = vmax.f32 %v755, %v756
        %v762 = vrot.slane %v743, 6
        %v763 = vrot.slane %v750, 4
        %v764 = vrot.slane %v757, 2
        %v765 = vsel %vm686, %v736, %v762
        %vm766 = vcmask 1045508
        %v767 = vsel %vm766, %v763, %v764
        %v768 = vsel %vm496, %v765, %v767
        %v770 = vsub.f32 %v719, %v768
        %v771 = vmul.f32 %v770, 1.442695
        %v772 = vpow.pop %v771
        %774 = vst [vmem:[#allocation1] ss:$4 sm:$0xff] %v772
        %v775 = vld.sshfl [vmem:[#allocation1] sm:$0xff pattern:$0x73625140]
        %v776 = vld.sshfl [vmem:[#allocation1 + $0x8] sm:$0xff pattern:$0x73625140]
        %v777 = vld.sshfl [vmem:[#allocation1 + $0x10] sm:$0xff pattern:$0x73625140]
        %v778 = vld.sshfl [vmem:[#allocation1 + $0x18] sm:$0xff pattern:$0x73625140]
        %v783 = vsel %vm686, %v775, 0.0
        %v784 = vrot.slane %v783, 4
        %v785 = vadd.f32 %v783, %v784
        %v786 = vrot.slane %v785, 2
        %v787 = vadd.f32 %v785, %v786
        %v788 = vrot.slane %v787, 1
        %v789 = vadd.f32 %v787, %v788
        %v790 = vsel %vm686, %v776, 0.0
        %v791 = vrot.slane %v790, 4
        %v792 = vadd.f32 %v790, %v791
        %v793 = vrot.slane %v792, 2
        %v794 = vadd.f32 %v792, %v793
        %v795 = vrot.slane %v794, 1
        %v796 = vadd.f32 %v794, %v795
        %v797 = vsel %vm686, %v777, 0.0
        %v798 = vrot.slane %v797, 4
        %v799 = vadd.f32 %v797, %v798
        %v800 = vrot.slane %v799, 2
        %v801 = vadd.f32 %v799, %v800
        %v802 = vrot.slane %v801, 1
        %v803 = vadd.f32 %v801, %v802
        %v804 = vsel %vm686, %v778, 0.0
        %v805 = vrot.slane %v804, 4
        %v806 = vadd.f32 %v804, %v805
        %v807 = vrot.slane %v806, 2
        %v808 = vadd.f32 %v806, %v807
        %v809 = vrot.slane %v808, 1
        %v810 = vadd.f32 %v808, %v809
        %v811 = vlog2.pop %v789
        %v812 = vmul.f32 %v811, 0.6931472
        %v813 = vlog2.pop %v796
        %v814 = vmul.f32 %v813, 0.6931472
        %v815 = vlog2.pop %v803
        %v816 = vmul.f32 %v815, 0.6931472
        %v817 = vlog2.pop %v810
        %v818 = vmul.f32 %v817, 0.6931472
        %v819 = vadd.f32 %v812, %v736
        %v820 = vadd.f32 %v814, %v743
        %v821 = vadd.f32 %v816, %v750
        %v822 = vadd.f32 %v818, %v757
        %v823 = vlaneseq
        %v824 = vshrl.u32 %v823, 7
        %v825 = vperm.slane %v481, 0
        %v826 = vperm.slane %v481, 1
        %v827 = vperm.slane %v481, 2
        %v828 = vperm.slane %v481, 3
        %vm829 = vcmp.eq.s32.totalorder %v824, %v825
        %vm830 = vcmp.eq.s32.totalorder %v824, %v826
        %vm831 = vcmp.eq.s32.totalorder %v824, %v827
        %vm832 = vcmp.eq.s32.totalorder %v824, %v828
        %833 = vst [vmem:[#allocation1] ss:$4 sm:$0xff] %v719
        %v834 = vld.sshfl [vmem:[#allocation1] sm:$0xff pattern:$0x73625140]
        %v835 = vld.sshfl [vmem:[#allocation1 + $0x8] sm:$0xff pattern:$0x73625140]
        %v836 = vld.sshfl [vmem:[#allocation1 + $0x10] sm:$0xff pattern:$0x73625140]
        %v837 = vld.sshfl [vmem:[#allocation1 + $0x18] sm:$0xff pattern:$0x73625140]
        %v842 = vsel %vm829, %v834, 0.0
        %v843 = vsel %vm830, %v835, 0.0
        %v844 = vsel %vm831, %v836, 0.0
        %v845 = vsel %vm832, %v837, 0.0
        %v846 = vsel %vm686, %v842, 0.0
        %v847 = vrot.slane %v846, 4
        %v848 = vadd.f32 %v846, %v847
        %v849 = vrot.slane %v848, 2
        %v850 = vadd.f32 %v848, %v849
        %v851 = vrot.slane %v850, 1
        %v852 = vadd.f32 %v850, %v851
        %v853 = vsel %vm686, %v843, 0.0
        %v854 = vrot.slane %v853, 4
        %v855 = vadd.f32 %v853, %v854
        %v856 = vrot.slane %v855, 2
        %v857 = vadd.f32 %v855, %v856
        %v858 = vrot.slane %v857, 1
        %v859 = vadd.f32 %v857, %v858
        %v860 = vsel %vm686, %v844, 0.0
        %v861 = vrot.slane %v860, 4
        %v862 = vadd.f32 %v860, %v861
        %v863 = vrot.slane %v862, 2
        %v864 = vadd.f32 %v862, %v863
        %v865 = vrot.slane %v864, 1
        %v866 = vadd.f32 %v864, %v865
        %v867 = vsel %vm686, %v845, 0.0
        %v868 = vrot.slane %v867, 4
        %v869 = vadd.f32 %v867, %v868
        %v870 = vrot.slane %v869, 2
        %v871 = vadd.f32 %v869, %v870
        %v872 = vrot.slane %v871, 1
        %v873 = vadd.f32 %v871, %v872
        %v874 = vsub.f32 %v819, %v852
        %v875 = vsub.f32 %v820, %v859
        %v876 = vsub.f32 %v821, %v866
        %v877 = vsub.f32 %v822, %v873
        %s878 = sadd.s32 %s30, %s31
        %v879 = vlaneseq
        %v880 = vand.u32 %v879, 127
        %v881 = vadd.s32 %v880, 128
        %v882 = vadd.s32 %v880, 256
        %v883 = vadd.s32 %v880, 384
        %s884 = smul.u32 %s878, 512
        %v885 = vstv %s884
        %v886 = vadd.s32 %v880, %v885
        %v887 = vadd.s32 %v881, %v885
        %v888 = vadd.s32 %v882, %v885
        %v889 = vadd.s32 %v883, %v885
        %vm890 = vcmp.lt.s32.totalorder %v886, 392
        %vm891 = vcmp.lt.s32.totalorder %v887, 392
        %vm892 = vcmp.lt.s32.totalorder %v888, 392
        %vm893 = vcmp.lt.s32.totalorder %v889, 392
        %v894 = vsel %vm890, %v874, -1.0
        %v895 = vsel %vm891, %v875, -1.0
        %v896 = vsel %vm892, %v876, -1.0
        %v897 = vsel %vm893, %v877, -1.0
        %v902 = vrot.slane %v895, 7
        %v903 = vrot.slane %v896, 6
        %v904 = vrot.slane %v897, 5
        %vm905 = vcmask 1040384
        %v906 = vsel %vm905, %v894, %v902
        %vm907 = vcmask 1042434
        %v908 = vsel %vm907, %v903, %v904
        %v909 = vsel %vm686, %v906, %v908
        %v911 = vlaneseq
        %vm912 = vcmp.ge.s32.totalorder %v911, 0
        %vm913 = vcmp.lt.s32.totalorder %v911, 512
        %vm914 = vmand %vm912, %vm913
        %915 = vst.msk [vmem:[%s411] sm:$0xf] %vm914, %v909
        %v916 = vcvt.s32.f32 %v515
        %v917 = vcvt.s32.f32 %v669
        %v919 = vperm.slane %v916, 0
        %v920 = vperm.slane %v916, 1
        %v921 = vperm.slane %v916, 2
        %v922 = vperm.slane %v916, 3
        %v928 = vperm.slane %v917, 0
        %v929 = vperm.slane %v917, 1
        %v930 = vperm.slane %v917, 2
        %v931 = vperm.slane %v917, 3
        %v936 = vsel %vm905, %v547, %v694
        %v937 = vsel %vm905, %v554, %v702
        %v938 = vsel %vm905, %v561, %v710
        %v939 = vsel %vm905, %v568, %v718
        %v940 = vsel %vm686, %v936, %v919
        %v941 = vsel %vm686, %v937, %v920
        %v942 = vsel %vm686, %v938, %v921
        %v943 = vsel %vm686, %v939, %v922
        %vm944 = vcmask 1042432
        %v945 = vsel %vm944, %v940, %v928
        %v946 = vsel %vm944, %v941, %v929
        %v947 = vsel %vm944, %v942, %v930
        %v948 = vsel %vm944, %v943, %v931
        %p949 = scmp.eq.s32.totalorder %s31, 0
        // Predicated region
        $region41: #{tpu_custom_call.1} parent=39 // pred_check
          %p950 = pneg %p949
        $region42: #{tpu_custom_call.1} parent=39 // pred_check_branch
          %952 = sbr.rel (%p950) target = $region44
        $region43: #{tpu_custom_call.1} parent=39 // pred_region
          %953 = vst [vmem:[%s418] sm:$0xff] 0.0
          %954 = vst [vmem:[%s418 + $0x8] sm:$0xff] 0.0
        $region44: #{tpu_custom_call.1} parent=39 // pred_fallthru
          _
        %v955 = vld [vmem:[%s418] sm:$0xff]
        %v956 = vld [vmem:[%s418 + $0x8] sm:$0xff]
        %v961 = vrot.slane %v946, 4
        %v962 = vrot.slane %v948, 4
        %v963 = vsel %vm496, %v945, %v961
        %v964 = vsel %vm496, %v947, %v962
        %v967 = vadd.f32 %v955, %v963
        %v968 = vadd.f32 %v956, %v964
        %969 = vst [vmem:[%s418] sm:$0xff] %v967
        %970 = vst [vmem:[%s418 + $0x8] sm:$0xff] %v968
        %s971 = sand.u32 %s205, 1
        %s972 = scalar_lea.sflag [#allocation3], %s971
        %s973 = sand.u32 %s205, 1
        %s974 = smul.addr %s973, 4
        %s975 = scalar_lea.vmem [#allocation2], %s974
        %s976 = sand.u32 %s233, 1
        %s977 = scalar_lea.sflag [#allocation5], %s976
        %s978 = sand.u32 %s233, 1
        %s979 = smul.addr %s978, 16
        %s980 = scalar_lea.vmem [#allocation4], %s979
        // Predicated region
        $region45: #{tpu_custom_call.1} parent=39 // pred_check
          %p981 = pneg %p215
        $region46: #{tpu_custom_call.1} parent=39 // pred_check_branch
          %983 = sbr.rel (%p981) target = $region48
        $region47: #{tpu_custom_call.1} parent=39 // pred_region
          %s984 = sadd.s32 %s30, %s31
          %s985 = smul.u32 4, %s984
          %987 = vsyncadd %s972, 0
          %s988 = smul.addr %s29, 4
          %s989 = sadd.s32 %s985, %s988
          %s990 = scalar_lea.hbm %s5, %s989
          %s992 = sshll.u32 %s975, 4
          %s993 = int_to_ptr.vmem [resolvable:$true] %s992
          %s994 = sshll.u32 %s990, 4
          %s995 = int_to_ptr.hbm [resolvable:$true] %s994
          %997 = dma.vmem_to_hbm [thread:$0]  %s993, 64, %s995, %s972
        $region48: #{tpu_custom_call.1} parent=39 // pred_fallthru
          _
        // Predicated region
        $region49: #{tpu_custom_call.1} parent=39 // pred_check
          %p998 = pneg %p243
        $region50: #{tpu_custom_call.1} parent=39 // pred_check_branch
          %1000 = sbr.rel (%p998) target = $region52
        $region51: #{tpu_custom_call.1} parent=39 // pred_region
          %s1001 = sadd.s32 %s29, %s30
          %1003 = vsyncadd %s977, 0
          %s1004 = smul.addr %s1001, 4
          %s1005 = smul.addr %s1004, 4
          %s1006 = scalar_lea.hbm %s6, %s1005
          %s1008 = sshll.u32 %s980, 4
          %s1009 = int_to_ptr.vmem [resolvable:$true] %s1008
          %s1010 = sshll.u32 %s1006, 4
          %s1011 = int_to_ptr.hbm [resolvable:$true] %s1010
          %1013 = dma.vmem_to_hbm [thread:$0]  %s1009, 256, %s1011, %s977
        $region52: #{tpu_custom_call.1} parent=39 // pred_fallthru
          _
      $region40: #{tpu_custom_call.1} parent=5 // pred_fallthru
        _
      %p1014 = scmp.le.s32.totalorder 2, %s19
      // Predicated region
      $region53: #{tpu_custom_call.1} parent=5 // pred_check
        %p1015 = pneg %p1014
      $region54: #{tpu_custom_call.1} parent=5 // pred_check_branch
        %1017 = sbr.rel (%p1015) target = $region56
      $region55: #{tpu_custom_call.1} parent=5 // pred_region
        %s1018 = ssub.s32 %s19, 2
        // Predicated region
        $region57: #{tpu_custom_call.1} parent=55 // pred_check
          %p1019 = pneg %p221
        $region58: #{tpu_custom_call.1} parent=55 // pred_check_branch
          %1021 = sbr.rel (%p1019) target = $region60
        $region59: #{tpu_custom_call.1} parent=55 // pred_region
          %s1022 = sand.u32 %s206, 1
          %s1023 = scalar_lea.sflag [#allocation3], %s1022
          %s1024 = sand.u32 %s206, 1
          %s1025 = smul.addr %s1024, 4
          %s1026 = scalar_lea.vmem [#allocation2], %s1025
          %1028 = dma.done %s1023, 64
        $region60: #{tpu_custom_call.1} parent=55 // pred_fallthru
          _
        // Predicated region
        $region61: #{tpu_custom_call.1} parent=55 // pred_check
          %p1029 = pneg %p249
        $region62: #{tpu_custom_call.1} parent=55 // pred_check_branch
          %1031 = sbr.rel (%p1029) target = $region64
        $region63: #{tpu_custom_call.1} parent=55 // pred_region
          %s1032 = sand.u32 %s234, 1
          %s1033 = scalar_lea.sflag [#allocation5], %s1032
          %s1034 = sand.u32 %s234, 1
          %s1035 = smul.addr %s1034, 16
          %s1036 = scalar_lea.vmem [#allocation4], %s1035
          %1038 = dma.done %s1033, 256
        $region64: #{tpu_custom_call.1} parent=55 // pred_fallthru
          _
      $region56: #{tpu_custom_call.1} parent=5 // pred_fallthru
        _
    $region6: #{tpu_custom_call.1} parent=1 // loop_footer
      %s23 = sadd.s32 1, %s19
    $region7: #{tpu_custom_call.1} parent=1 // loop_footer_branch
      %18 = sbr.rel target = $region3
    $region8: #{tpu_custom_call.1} parent=1 // loop_exit
      _
    %1039 = vsyncpa [#allocation3], 1
    %s1040 = scalar_lea.sflag [#allocation3], 1
    %1041 = vsyncpa %s1040, 1
    %1042 = vsyncpa [#allocation5], 1
    %s1043 = scalar_lea.sflag [#allocation5], 1
    %1044 = vsyncpa %s1043, 1

</llo_original>
